<compile_context>
chip_gen: v6e
topology: v6e:2x2x1
jax: 0.10.0
libtpu: 0.0.40
codegen_flags: <defaults>
</compile_context>

<pallas_src>
import functools

import jax
import jax.numpy as jnp
import numpy as np
from jax import lax
from jax.experimental import pallas as pl
from jax.experimental.pallas import tpu as pltpu

EMBED_DIM = 128   # synthetic CLIP embedding dim (real CLIP-L is 768)
EPS = 1e-12       # F.normalize(p=2) clamp_min eps
LANES = 128       # lane width used for the packed, lane-dense output


# ----------------------------------------------------------------------------
# Fused kernel: image encode + text encode (prompt & style) + metric math
# ----------------------------------------------------------------------------
def _fused_clip_metric_kernel(x_ref, wimg_ref, ptok_ref, stok_ref, wtxt_ref,
                              out_ref, *, alpha):
    # ---- image encoder: bf16 (N, F) @ (F, D), f32 acc, f32 L2-normalize -----
    img_f = jnp.dot(x_ref[...], wimg_ref[...],
                    preferred_element_type=jnp.float32)            # [N, D] f32
    img_inv = lax.rsqrt(jnp.maximum(
        jnp.sum(img_f * img_f, axis=-1, keepdims=True), EPS * EPS))
    img = img_f * img_inv                                          # [N, D]

    # ---- text encoder: mean-pool tokens (f32), bf16 project, f32 normalize --
    # mean-pool before the projection is exact because the synthetic text
    # encoder is linear.
    w_txt = wtxt_ref[...]                                          # [E, D] bf16
    prompt_mean = jnp.mean(ptok_ref[...], axis=0, keepdims=True)   # [1, E] f32
    style_mean = jnp.mean(stok_ref[...], axis=0, keepdims=True)    # [1, E] f32
    txt_p = jnp.dot(prompt_mean.astype(jnp.bfloat16), w_txt,
                    preferred_element_type=jnp.float32)            # [1, D] f32
    txt_s = jnp.dot(style_mean.astype(jnp.bfloat16), w_txt,
                    preferred_element_type=jnp.float32)            # [1, D] f32
    prompt_feat = txt_p * lax.rsqrt(jnp.maximum(
        jnp.sum(txt_p * txt_p, axis=-1, keepdims=True), EPS * EPS))
    style_feat = txt_s * lax.rsqrt(jnp.maximum(
        jnp.sum(txt_s * txt_s, axis=-1, keepdims=True), EPS * EPS))

    # ---- metric: mean over images, cosine sims, alpha blend -----------------
    mean_img = jnp.mean(img, axis=0, keepdims=True)                        # [1, D]
    style_score = jnp.sum(mean_img * style_feat, axis=-1, keepdims=True)   # [1, 1]
    content_score = jnp.sum(img * prompt_feat, axis=-1, keepdims=True)     # [N, 1]
    score = alpha * style_score + (1.0 - alpha) * content_score            # [N, 1]

    # Lane-dense packed output: [content | score | style] x 128 lanes each.
    n = out_ref.shape[0]
    out_ref[:, 0:LANES] = jnp.broadcast_to(content_score, (n, LANES))
    out_ref[:, LANES:2 * LANES] = jnp.broadcast_to(score, (n, LANES))
    out_ref[:, 2 * LANES:3 * LANES] = jnp.broadcast_to(style_score, (n, LANES))


# ----------------------------------------------------------------------------
# Clip_metric.forward equivalent (single gridless pallas_call)
# ----------------------------------------------------------------------------
def clip_metric_forward(output_imgs, prompt_tokens, style_tokens,
                        w_img, w_txt, alpha=0.5):
    # TODO(synk): the pretrained CLIP ViT/text transformer, tokenizer and
    # bicubic-resize / center-crop image preprocessing have no clean Pallas
    # equivalent here; they are stood in for by deterministic linear encoders.
    n = output_imgs.shape[0]
    x_flat = output_imgs.reshape(n, -1).astype(jnp.bfloat16)      # bf16 DMA
    w_img_bf = w_img.astype(jnp.bfloat16)
    w_txt_bf = w_txt.astype(jnp.bfloat16)
    prompt_tokens = prompt_tokens.astype(jnp.float32)
    style_tokens = style_tokens.astype(jnp.float32)

    kernel = functools.partial(_fused_clip_metric_kernel, alpha=float(alpha))
    vmem = lambda: pl.BlockSpec(memory_space=pltpu.MemorySpace.VMEM)
    packed = pl.pallas_call(
        kernel,
        out_shape=jax.ShapeDtypeStruct((n, 3 * LANES), jnp.float32),
        in_specs=[vmem(), vmem(), vmem(), vmem(), vmem()],
        out_specs=vmem(),
    )(x_flat, w_img_bf, prompt_tokens, style_tokens, w_txt_bf)

    content_score = packed[:, 0]              # (N,)
    score = packed[:, LANES]                  # (N,)
    style_score = packed[0:1, 2 * LANES]      # (1,)
    return {"score": score,
            "style_score": style_score,
            "content_score": content_score}


if __name__ == "__main__":
    key = jax.random.PRNGKey(0)
    k_img, k_wimg, k_wtxt, k_style, k_prompt = jax.random.split(key, 5)

    N, C, H, W = 8, 3, 16, 16        # batch of generated images, NCHW
    T = 8                            # synthetic token count per prompt
    F_DIM = C * H * W                # 768
    ALPHA = 0.5

    output_imgs = jax.random.normal(k_img, (N, C, H, W), jnp.float32)
    w_img = jax.random.normal(k_wimg, (F_DIM, EMBED_DIM), jnp.float32) * 0.02
    w_txt = jax.random.normal(k_wtxt, (EMBED_DIM, EMBED_DIM), jnp.float32) * 0.02
    style_tokens = jax.random.normal(k_style, (T, EMBED_DIM), jnp.float32)
    prompt_tokens = jax.random.normal(k_prompt, (T, EMBED_DIM), jnp.float32)

    out = clip_metric_forward(output_imgs, prompt_tokens, style_tokens,
                              w_img, w_txt, ALPHA)
    out = jax.block_until_ready(out)

    # pure-JAX reference for correctness (mirrors the kernel's bf16 matmul
    # operands with f32 accumulation; everything else f32)
    def _norm(x):
        return x / jnp.maximum(jnp.linalg.norm(x, axis=-1, keepdims=True), EPS)

    x_ref = output_imgs.reshape(N, -1).astype(jnp.bfloat16)
    imgf = _norm(jnp.dot(x_ref, w_img.astype(jnp.bfloat16),
                         preferred_element_type=jnp.float32))
    promptf = _norm(jnp.dot(
        prompt_tokens.mean(0, keepdims=True).astype(jnp.bfloat16),
        w_txt.astype(jnp.bfloat16), preferred_element_type=jnp.float32))
    stylef = _norm(jnp.dot(
        style_tokens.mean(0, keepdims=True).astype(jnp.bfloat16),
        w_txt.astype(jnp.bfloat16), preferred_element_type=jnp.float32))
    style_ref = jnp.sum(imgf.mean(0, keepdims=True) * stylef, axis=-1)   # (1,)
    content_ref = jnp.sum(imgf * promptf, axis=-1)                       # (N,)
    score_ref = ALPHA * style_ref + (1.0 - ALPHA) * content_ref          # (N,)

    assert out["style_score"].shape == (1,)
    assert out["content_score"].shape == (N,)
    assert out["score"].shape == (N,)
    assert np.allclose(np.asarray(out["style_score"]), np.asarray(style_ref), atol=2e-3)
    assert np.allclose(np.asarray(out["content_score"]), np.asarray(content_ref), atol=2e-3)
    assert np.allclose(np.asarray(out["score"]), np.asarray(score_ref), atol=2e-3)

    print("KERNEL_OK")
</pallas_src>

<mosaic_0001>
module attributes {stable_mosaic.version = 11 : i64} {
  func.func @_fused_clip_metric_kernel(%arg0: memref<8x768xbf16, #tpu.memory_space<vmem>>, %arg1: memref<768x128xbf16, #tpu.memory_space<vmem>>, %arg2: memref<8x128xf32, #tpu.memory_space<vmem>>, %arg3: memref<8x128xf32, #tpu.memory_space<vmem>>, %arg4: memref<128x128xbf16, #tpu.memory_space<vmem>>, %arg5: memref<8x384xf32, #tpu.memory_space<vmem>>) attributes {dimension_semantics = [], scalar_prefetch = 0 : i64, scratch_operands = 0 : i64, tpu.core_type = #tpu.core_type<tc>} {
    %c0 = arith.constant 0 : index
    %c0_0 = arith.constant 0 : index
    %0 = vector.load %arg0[%c0, %c0_0] : memref<8x768xbf16, #tpu.memory_space<vmem>>, vector<8x768xbf16>
    %c0_1 = arith.constant 0 : index
    %c0_2 = arith.constant 0 : index
    %1 = vector.load %arg1[%c0_1, %c0_2] : memref<768x128xbf16, #tpu.memory_space<vmem>>, vector<768x128xbf16>
    %cst = arith.constant dense<0.000000e+00> : vector<8x128xf32>
    %2 = tpu.matmul %0, %1, %cst {dimension_numbers = #tpu.dot_dimension_numbers<[1], [0], [0], [1], [0, 0, 1, 1], [], []>} : vector<8x768xbf16>, vector<768x128xbf16>, vector<8x128xf32> -> vector<8x128xf32>
    %3 = arith.mulf %2, %2 : vector<8x128xf32>
    %cst_3 = arith.constant dense<0.000000e+00> : vector<8xf32>
    %4 = vector.multi_reduction <add>, %3, %cst_3 [1] : vector<8x128xf32> to vector<8xf32>
    %5 = vector.shape_cast %4 : vector<8xf32> to vector<8x1xf32>
    %cst_4 = arith.constant 1.000000e-24 : f32
    %6 = vector.broadcast %cst_4 : f32 to vector<8x1xf32>
    %7 = arith.maximumf %5, %6 : vector<8x1xf32>
    %8 = math.rsqrt %7 : vector<8x1xf32>
    %9 = vector.broadcast %8 : vector<8x1xf32> to vector<8x128xf32>
    %10 = arith.mulf %2, %9 : vector<8x128xf32>
    %c0_5 = arith.constant 0 : index
    %c0_6 = arith.constant 0 : index
    %11 = vector.load %arg4[%c0_5, %c0_6] : memref<128x128xbf16, #tpu.memory_space<vmem>>, vector<128x128xbf16>
    %c0_7 = arith.constant 0 : index
    %c0_8 = arith.constant 0 : index
    %12 = vector.load %arg2[%c0_7, %c0_8] : memref<8x128xf32, #tpu.memory_space<vmem>>, vector<8x128xf32>
    %cst_9 = arith.constant dense<0.000000e+00> : vector<128xf32>
    %13 = vector.multi_reduction <add>, %12, %cst_9 [0] : vector<8x128xf32> to vector<128xf32>
    %14 = vector.shape_cast %13 : vector<128xf32> to vector<1x128xf32>
    %cst_10 = arith.constant 8.000000e+00 : f32
    %15 = vector.broadcast %cst_10 : f32 to vector<1x128xf32>
    %16 = arith.divf %14, %15 : vector<1x128xf32>
    %c0_11 = arith.constant 0 : index
    %c0_12 = arith.constant 0 : index
    %17 = vector.load %arg3[%c0_11, %c0_12] : memref<8x128xf32, #tpu.memory_space<vmem>>, vector<8x128xf32>
    %cst_13 = arith.constant dense<0.000000e+00> : vector<128xf32>
    %18 = vector.multi_reduction <add>, %17, %cst_13 [0] : vector<8x128xf32> to vector<128xf32>
    %19 = vector.shape_cast %18 : vector<128xf32> to vector<1x128xf32>
    %cst_14 = arith.constant 8.000000e+00 : f32
    %20 = vector.broadcast %cst_14 : f32 to vector<1x128xf32>
    %21 = arith.divf %19, %20 : vector<1x128xf32>
    %22 = arith.truncf %16 : vector<1x128xf32> to vector<1x128xbf16>
    %cst_15 = arith.constant dense<0.000000e+00> : vector<1x128xf32>
    %23 = tpu.matmul %22, %11, %cst_15 {dimension_numbers = #tpu.dot_dimension_numbers<[1], [0], [0], [1], [0, 0, 1, 1], [], []>} : vector<1x128xbf16>, vector<128x128xbf16>, vector<1x128xf32> -> vector<1x128xf32>
    %24 = arith.truncf %21 : vector<1x128xf32> to vector<1x128xbf16>
    %cst_16 = arith.constant dense<0.000000e+00> : vector<1x128xf32>
    %25 = tpu.matmul %24, %11, %cst_16 {dimension_numbers = #tpu.dot_dimension_numbers<[1], [0], [0], [1], [0, 0, 1, 1], [], []>} : vector<1x128xbf16>, vector<128x128xbf16>, vector<1x128xf32> -> vector<1x128xf32>
    %26 = arith.mulf %23, %23 : vector<1x128xf32>
    %cst_17 = arith.constant dense<0.000000e+00> : vector<1xf32>
    %27 = vector.multi_reduction <add>, %26, %cst_17 [1] : vector<1x128xf32> to vector<1xf32>
    %28 = vector.shape_cast %27 : vector<1xf32> to vector<1x1xf32>
    %cst_18 = arith.constant 1.000000e-24 : f32
    %29 = vector.broadcast %cst_18 : f32 to vector<1x1xf32>
    %30 = arith.maximumf %28, %29 : vector<1x1xf32>
    %31 = math.rsqrt %30 : vector<1x1xf32>
    %32 = vector.broadcast %31 : vector<1x1xf32> to vector<1x128xf32>
    %33 = arith.mulf %23, %32 : vector<1x128xf32>
    %34 = arith.mulf %25, %25 : vector<1x128xf32>
    %cst_19 = arith.constant dense<0.000000e+00> : vector<1xf32>
    %35 = vector.multi_reduction <add>, %34, %cst_19 [1] : vector<1x128xf32> to vector<1xf32>
    %36 = vector.shape_cast %35 : vector<1xf32> to vector<1x1xf32>
    %cst_20 = arith.constant 1.000000e-24 : f32
    %37 = vector.broadcast %cst_20 : f32 to vector<1x1xf32>
    %38 = arith.maximumf %36, %37 : vector<1x1xf32>
    %39 = math.rsqrt %38 : vector<1x1xf32>
    %40 = vector.broadcast %39 : vector<1x1xf32> to vector<1x128xf32>
    %41 = arith.mulf %25, %40 : vector<1x128xf32>
    %cst_21 = arith.constant dense<0.000000e+00> : vector<128xf32>
    %42 = vector.multi_reduction <add>, %10, %cst_21 [0] : vector<8x128xf32> to vector<128xf32>
    %43 = vector.shape_cast %42 : vector<128xf32> to vector<1x128xf32>
    %cst_22 = arith.constant 8.000000e+00 : f32
    %44 = vector.broadcast %cst_22 : f32 to vector<1x128xf32>
    %45 = arith.divf %43, %44 : vector<1x128xf32>
    %46 = arith.mulf %45, %41 : vector<1x128xf32>
    %cst_23 = arith.constant dense<0.000000e+00> : vector<1xf32>
    %47 = vector.multi_reduction <add>, %46, %cst_23 [1] : vector<1x128xf32> to vector<1xf32>
    %48 = vector.shape_cast %47 : vector<1xf32> to vector<1x1xf32>
    %49 = vector.broadcast %33 : vector<1x128xf32> to vector<8x128xf32>
    %50 = arith.mulf %10, %49 : vector<8x128xf32>
    %cst_24 = arith.constant dense<0.000000e+00> : vector<8xf32>
    %51 = vector.multi_reduction <add>, %50, %cst_24 [1] : vector<8x128xf32> to vector<8xf32>
    %52 = vector.shape_cast %51 : vector<8xf32> to vector<8x1xf32>
    %cst_25 = arith.constant 5.000000e-01 : f32
    %53 = vector.broadcast %cst_25 : f32 to vector<1x1xf32>
    %54 = arith.mulf %53, %48 : vector<1x1xf32>
    %cst_26 = arith.constant 5.000000e-01 : f32
    %55 = vector.broadcast %cst_26 : f32 to vector<8x1xf32>
    %56 = arith.mulf %55, %52 : vector<8x1xf32>
    %57 = vector.broadcast %54 : vector<1x1xf32> to vector<8x1xf32>
    %58 = arith.addf %57, %56 : vector<8x1xf32>
    %59 = vector.shape_cast %52 : vector<8x1xf32> to vector<8x1xf32>
    %60 = vector.broadcast %59 : vector<8x1xf32> to vector<8x128xf32>
    %c0_27 = arith.constant 0 : index
    %c0_28 = arith.constant 0 : index
    %61 = vector.load %arg5[%c0_27, %c0_28] : memref<8x384xf32, #tpu.memory_space<vmem>>, vector<8x128xf32>
    tpu.vector_store %arg5[%c0_27, %c0_28], %60 {strides = array<i32>} : memref<8x384xf32, #tpu.memory_space<vmem>>, vector<8x128xf32>,
    %62 = vector.shape_cast %58 : vector<8x1xf32> to vector<8x1xf32>
    %63 = vector.broadcast %62 : vector<8x1xf32> to vector<8x128xf32>
    %c0_29 = arith.constant 0 : index
    %c128 = arith.constant 128 : index
    %64 = vector.load %arg5[%c0_29, %c128] : memref<8x384xf32, #tpu.memory_space<vmem>>, vector<8x128xf32>
    tpu.vector_store %arg5[%c0_29, %c128], %63 {strides = array<i32>} : memref<8x384xf32, #tpu.memory_space<vmem>>, vector<8x128xf32>,
    %65 = vector.shape_cast %48 : vector<1x1xf32> to vector<1x1xf32>
    %66 = vector.broadcast %65 : vector<1x1xf32> to vector<8x128xf32>
    %c0_30 = arith.constant 0 : index
    %c256 = arith.constant 256 : index
    %67 = vector.load %arg5[%c0_30, %c256] : memref<8x384xf32, #tpu.memory_space<vmem>>, vector<8x128xf32>
    tpu.vector_store %arg5[%c0_30, %c256], %66 {strides = array<i32>} : memref<8x384xf32, #tpu.memory_space<vmem>>, vector<8x128xf32>,
    return
  }
}

</mosaic_0001>

<llo_original>
// kernel: tpu_custom_call.1
$region0: #{tpu_custom_call.1}
  #allocation0 [shape = 'u32[]', space=smem, size = 0x4, offset = 0x4, fixed_abs, tag = 'smem constant byte address 0x4 - core index']
  #allocation1 [shape = 'u32[144,128]{1,0:T(1,128)}', space=vmem, size = 0x12000, scoped, tag = 'internal scratch']
  %s0 = inlined_call_operand.hbm [shape: bf16[8,768], index: 0, kind: input, shape index: {}]
  %s1 = inlined_call_operand.hbm [shape: bf16[768,128], index: 1, kind: input, shape index: {}]
  %s2 = inlined_call_operand.hbm [shape: f32[8,128], index: 2, kind: input, shape index: {}]
  %s3 = inlined_call_operand.hbm [shape: f32[8,128], index: 3, kind: input, shape index: {}]
  %s4 = inlined_call_operand.hbm [shape: bf16[128,128], index: 4, kind: input, shape index: {}]
  %s5 = inlined_call_operand.hbm [shape: f32[8,384], index: 5, kind: output, shape index: {}]
  %s6 = sld [smem:[#allocation0]]
  $region50: #{tpu_custom_call.1} parent=0
    _
  %s8 = ssub.s32 1, %s6
  %s9 = scalar_select 0, %s8, %s6
  $region1: #{tpu_custom_call.1} parent=0
    #allocation2 [shape = 'u8[12288]{0}', space=vmem, size = 0x3000, scoped, tag = 'input window, operand 0, single buffered']
    #allocation3 [shape = 's32[1]{0}', space=sflag, size = 0x4, scoped, tag = 'scoped memory for tpu_custom_call.1']
    #allocation4 [shape = 's32[1]{0}', space=sflag, size = 0x4, scoped, tag = 'scoped memory for tpu_custom_call.1']
    #allocation5 [shape = 'u8[196608]{0}', space=vmem, size = 0x30000, scoped, tag = 'input window, operand 1, single buffered']
    #allocation6 [shape = 's32[1]{0}', space=sflag, size = 0x4, scoped, tag = 'scoped memory for tpu_custom_call.1']
    #allocation7 [shape = 'u8[4096]{0}', space=vmem, size = 0x1000, scoped, tag = 'input window, operand 2, single buffered']
    #allocation8 [shape = 'u8[4096]{0}', space=vmem, size = 0x1000, scoped, tag = 'input window, operand 3, single buffered']
    #allocation9 [shape = 's32[1]{0}', space=sflag, size = 0x4, scoped, tag = 'scoped memory for tpu_custom_call.1']
    #allocation10 [shape = 'u8[32768]{0}', space=vmem, size = 0x8000, scoped, tag = 'input window, operand 4, single buffered']
    #allocation11 [shape = 'u8[12288]{0}', space=vmem, size = 0x3000, scoped, tag = 'output window, operand 0, single buffered']
    %10 = vsyncpa [#allocation3], 0
    %11 = vsyncpa [#allocation6], 0
    %12 = vsyncpa [#allocation9], 0
    %13 = vsyncpa [#allocation4], 0
    // Predicated region
    $region2: #{tpu_custom_call.1} parent=1 // pred_check
      _
    $region3: #{tpu_custom_call.1} parent=1 // pred_check_branch
      %15 = sbr.rel (0) target = $region5
    $region4: #{tpu_custom_call.1} parent=1 // pred_region
      %s17 = ssub.s32 384, 384
      %18 = vsyncadd [#allocation3], %s17
      %s20 = sshll.u32 [#allocation2], 4
      %s21 = int_to_ptr.vmem [resolvable:$true] %s20
      %23 = dma.hbm_to_vmem [thread:$0]  %s0, 384, %s21, [#allocation3]
    $region5: #{tpu_custom_call.1} parent=1 // pred_fallthru
      _
    // Predicated region
    $region6: #{tpu_custom_call.1} parent=1 // pred_check
      _
    $region7: #{tpu_custom_call.1} parent=1 // pred_check_branch
      %25 = sbr.rel (0) target = $region9
    $region8: #{tpu_custom_call.1} parent=1 // pred_region
      %s27 = ssub.s32 6144, 6144
      %28 = vsyncadd [#allocation6], %s27
      %s29 = sshll.u32 [#allocation5], 4
      %s30 = int_to_ptr.vmem [resolvable:$true] %s29
      %35 = dma.hbm_to_vmem [thread:$0]  %s1, 6144, %s30, [#allocation6], 64, 64, 4
    $region9: #{tpu_custom_call.1} parent=1 // pred_fallthru
      _
    // Predicated region
    $region10: #{tpu_custom_call.1} parent=1 // pred_check
      _
    $region11: #{tpu_custom_call.1} parent=1 // pred_check_branch
      %37 = sbr.rel (0) target = $region13
    $region12: #{tpu_custom_call.1} parent=1 // pred_region
      %s39 = ssub.s32 128, 128
      %40 = vsyncadd [#allocation6], %s39
      %s42 = sshll.u32 [#allocation7], 4
      %s43 = int_to_ptr.vmem [resolvable:$true] %s42
      %45 = dma.hbm_to_vmem [thread:$0]  %s2, 128, %s43, [#allocation6]
    $region13: #{tpu_custom_call.1} parent=1 // pred_fallthru
      _
    // Predicated region
    $region14: #{tpu_custom_call.1} parent=1 // pred_check
      _
    $region15: #{tpu_custom_call.1} parent=1 // pred_check_branch
      %47 = sbr.rel (0) target = $region17
    $region16: #{tpu_custom_call.1} parent=1 // pred_region
      %s49 = ssub.s32 128, 128
      %50 = vsyncadd [#allocation9], %s49
      %s52 = sshll.u32 [#allocation8], 4
      %s53 = int_to_ptr.vmem [resolvable:$true] %s52
      %55 = dma.hbm_to_vmem [thread:$0]  %s3, 128, %s53, [#allocation9]
    $region17: #{tpu_custom_call.1} parent=1 // pred_fallthru
      _
    // Predicated region
    $region18: #{tpu_custom_call.1} parent=1 // pred_check
      _
    $region19: #{tpu_custom_call.1} parent=1 // pred_check_branch
      %57 = sbr.rel (0) target = $region21
    $region20: #{tpu_custom_call.1} parent=1 // pred_region
      %s59 = ssub.s32 1024, 1024
      %60 = vsyncadd [#allocation9], %s59
      %s61 = sshll.u32 [#allocation10], 4
      %s62 = int_to_ptr.vmem [resolvable:$true] %s61
      %67 = dma.hbm_to_vmem [thread:$0]  %s4, 1024, %s62, [#allocation9], 64, 64, 4
    $region21: #{tpu_custom_call.1} parent=1 // pred_fallthru
      _
    // Predicated region
    $region22: #{tpu_custom_call.1} parent=1 // pred_check
      _
    $region23: #{tpu_custom_call.1} parent=1 // pred_check_branch
      %69 = sbr.rel (0) target = $region25
    $region24: #{tpu_custom_call.1} parent=1 // pred_region
      %70 = dma.done [#allocation3], 384
    $region25: #{tpu_custom_call.1} parent=1 // pred_fallthru
      _
    // Predicated region
    $region26: #{tpu_custom_call.1} parent=1 // pred_check
      _
    $region27: #{tpu_custom_call.1} parent=1 // pred_check_branch
      %72 = sbr.rel (0) target = $region29
    $region28: #{tpu_custom_call.1} parent=1 // pred_region
      %73 = dma.done [#allocation6], 6144
    $region29: #{tpu_custom_call.1} parent=1 // pred_fallthru
      _
    // Predicated region
    $region30: #{tpu_custom_call.1} parent=1 // pred_check
      _
    $region31: #{tpu_custom_call.1} parent=1 // pred_check_branch
      %75 = sbr.rel (0) target = $region33
    $region32: #{tpu_custom_call.1} parent=1 // pred_region
      %76 = dma.done [#allocation6], 128
    $region33: #{tpu_custom_call.1} parent=1 // pred_fallthru
      _
    // Predicated region
    $region34: #{tpu_custom_call.1} parent=1 // pred_check
      _
    $region35: #{tpu_custom_call.1} parent=1 // pred_check_branch
      %78 = sbr.rel (0) target = $region37
    $region36: #{tpu_custom_call.1} parent=1 // pred_region
      %79 = dma.done [#allocation9], 128
    $region37: #{tpu_custom_call.1} parent=1 // pred_fallthru
      _
    // Predicated region
    $region38: #{tpu_custom_call.1} parent=1 // pred_check
      _
    $region39: #{tpu_custom_call.1} parent=1 // pred_check_branch
      %81 = sbr.rel (0) target = $region41
    $region40: #{tpu_custom_call.1} parent=1 // pred_region
      %82 = dma.done [#allocation9], 1024
    $region41: #{tpu_custom_call.1} parent=1 // pred_fallthru
      _
    %v84 = vld [vmem:[#allocation2] sm:$0xff]
    %v85 = vld [vmem:[#allocation2 + $0x8] sm:$0xff]
    %v86 = vld [vmem:[#allocation2 + $0x10] sm:$0xff]
    %v87 = vld [vmem:[#allocation5] sm:$0xf]
    %v88 = vld [vmem:[#allocation5 + $0x4] sm:$0xf]
    %v89 = vld [vmem:[#allocation5 + $0x8] sm:$0xf]
    %v90 = vld [vmem:[#allocation5 + $0xc] sm:$0xf]
    %v91 = vld [vmem:[#allocation5 + $0x10] sm:$0xf]
    %v92 = vld [vmem:[#allocation5 + $0x14] sm:$0xf]
    %v93 = vld [vmem:[#allocation5 + $0x18] sm:$0xf]
    %v94 = vld [vmem:[#allocation5 + $0x1c] sm:$0xf]
    %v95 = vld [vmem:[#allocation5 + $0x20] sm:$0xf]
    %v96 = vld [vmem:[#allocation5 + $0x24] sm:$0xf]
    %v97 = vld [vmem:[#allocation5 + $0x28] sm:$0xf]
    %v98 = vld [vmem:[#allocation5 + $0x2c] sm:$0xf]
    %v99 = vld [vmem:[#allocation5 + $0x30] sm:$0xf]
    %v100 = vld [vmem:[#allocation5 + $0x34] sm:$0xf]
    %v101 = vld [vmem:[#allocation5 + $0x38] sm:$0xf]
    %v102 = vld [vmem:[#allocation5 + $0x3c] sm:$0xf]
    %v103 = vld [vmem:[#allocation5 + $0x40] sm:$0xf]
    %v104 = vld [vmem:[#allocation5 + $0x44] sm:$0xf]
    %v105 = vld [vmem:[#allocation5 + $0x48] sm:$0xf]
    %v106 = vld [vmem:[#allocation5 + $0x4c] sm:$0xf]
    %v107 = vld [vmem:[#allocation5 + $0x50] sm:$0xf]
    %v108 = vld [vmem:[#allocation5 + $0x54] sm:$0xf]
    %v109 = vld [vmem:[#allocation5 + $0x58] sm:$0xf]
    %v110 = vld [vmem:[#allocation5 + $0x5c] sm:$0xf]
    %v111 = vld [vmem:[#allocation5 + $0x60] sm:$0xf]
    %v112 = vld [vmem:[#allocation5 + $0x64] sm:$0xf]
    %v113 = vld [vmem:[#allocation5 + $0x68] sm:$0xf]
    %v114 = vld [vmem:[#allocation5 + $0x6c] sm:$0xf]
    %v115 = vld [vmem:[#allocation5 + $0x70] sm:$0xf]
    %v116 = vld [vmem:[#allocation5 + $0x74] sm:$0xf]
    %v117 = vld [vmem:[#allocation5 + $0x78] sm:$0xf]
    %v118 = vld [vmem:[#allocation5 + $0x7c] sm:$0xf]
    %v119 = vld [vmem:[#allocation5 + $0x80] sm:$0xf]
    %v120 = vld [vmem:[#allocation5 + $0x84] sm:$0xf]
    %v121 = vld [vmem:[#allocation5 + $0x88] sm:$0xf]
    %v122 = vld [vmem:[#allocation5 + $0x8c] sm:$0xf]
    %v123 = vld [vmem:[#allocation5 + $0x90] sm:$0xf]
    %v124 = vld [vmem:[#allocation5 + $0x94] sm:$0xf]
    %v125 = vld [vmem:[#allocation5 + $0x98] sm:$0xf]
    %v126 = vld [vmem:[#allocation5 + $0x9c] sm:$0xf]
    %v127 = vld [vmem:[#allocation5 + $0xa0] sm:$0xf]
    %v128 = vld [vmem:[#allocation5 + $0xa4] sm:$0xf]
    %v129 = vld [vmem:[#allocation5 + $0xa8] sm:$0xf]
    %v130 = vld [vmem:[#allocation5 + $0xac] sm:$0xf]
    %v131 = vld [vmem:[#allocation5 + $0xb0] sm:$0xf]
    %v132 = vld [vmem:[#allocation5 + $0xb4] sm:$0xf]
    %v133 = vld [vmem:[#allocation5 + $0xb8] sm:$0xf]
    %v134 = vld [vmem:[#allocation5 + $0xbc] sm:$0xf]
    %v135 = vld [vmem:[#allocation5 + $0xc0] sm:$0xf]
    %v136 = vld [vmem:[#allocation5 + $0xc4] sm:$0xf]
    %v137 = vld [vmem:[#allocation5 + $0xc8] sm:$0xf]
    %v138 = vld [vmem:[#allocation5 + $0xcc] sm:$0xf]
    %v139 = vld [vmem:[#allocation5 + $0xd0] sm:$0xf]
    %v140 = vld [vmem:[#allocation5 + $0xd4] sm:$0xf]
    %v141 = vld [vmem:[#allocation5 + $0xd8] sm:$0xf]
    %v142 = vld [vmem:[#allocation5 + $0xdc] sm:$0xf]
    %v143 = vld [vmem:[#allocation5 + $0xe0] sm:$0xf]
    %v144 = vld [vmem:[#allocation5 + $0xe4] sm:$0xf]
    %v145 = vld [vmem:[#allocation5 + $0xe8] sm:$0xf]
    %v146 = vld [vmem:[#allocation5 + $0xec] sm:$0xf]
    %v147 = vld [vmem:[#allocation5 + $0xf0] sm:$0xf]
    %v148 = vld [vmem:[#allocation5 + $0xf4] sm:$0xf]
    %v149 = vld [vmem:[#allocation5 + $0xf8] sm:$0xf]
    %v150 = vld [vmem:[#allocation5 + $0xfc] sm:$0xf]
    %v151 = vld [vmem:[#allocation5 + $0x100] sm:$0xf]
    %v152 = vld [vmem:[#allocation5 + $0x104] sm:$0xf]
    %v153 = vld [vmem:[#allocation5 + $0x108] sm:$0xf]
    %v154 = vld [vmem:[#allocation5 + $0x10c] sm:$0xf]
    %v155 = vld [vmem:[#allocation5 + $0x110] sm:$0xf]
    %v156 = vld [vmem:[#allocation5 + $0x114] sm:$0xf]
    %v157 = vld [vmem:[#allocation5 + $0x118] sm:$0xf]
    %v158 = vld [vmem:[#allocation5 + $0x11c] sm:$0xf]
    %v159 = vld [vmem:[#allocation5 + $0x120] sm:$0xf]
    %v160 = vld [vmem:[#allocation5 + $0x124] sm:$0xf]
    %v161 = vld [vmem:[#allocation5 + $0x128] sm:$0xf]
    %v162 = vld [vmem:[#allocation5 + $0x12c] sm:$0xf]
    %v163 = vld [vmem:[#allocation5 + $0x130] sm:$0xf]
    %v164 = vld [vmem:[#allocation5 + $0x134] sm:$0xf]
    %v165 = vld [vmem:[#allocation5 + $0x138] sm:$0xf]
    %v166 = vld [vmem:[#allocation5 + $0x13c] sm:$0xf]
    %v167 = vld [vmem:[#allocation5 + $0x140] sm:$0xf]
    %v168 = vld [vmem:[#allocation5 + $0x144] sm:$0xf]
    %v169 = vld [vmem:[#allocation5 + $0x148] sm:$0xf]
    %v170 = vld [vmem:[#allocation5 + $0x14c] sm:$0xf]
    %v171 = vld [vmem:[#allocation5 + $0x150] sm:$0xf]
    %v172 = vld [vmem:[#allocation5 + $0x154] sm:$0xf]
    %v173 = vld [vmem:[#allocation5 + $0x158] sm:$0xf]
    %v174 = vld [vmem:[#allocation5 + $0x15c] sm:$0xf]
    %v175 = vld [vmem:[#allocation5 + $0x160] sm:$0xf]
    %v176 = vld [vmem:[#allocation5 + $0x164] sm:$0xf]
    %v177 = vld [vmem:[#allocation5 + $0x168] sm:$0xf]
    %v178 = vld [vmem:[#allocation5 + $0x16c] sm:$0xf]
    %v179 = vld [vmem:[#allocation5 + $0x170] sm:$0xf]
    %v180 = vld [vmem:[#allocation5 + $0x174] sm:$0xf]
    %v181 = vld [vmem:[#allocation5 + $0x178] sm:$0xf]
    %v182 = vld [vmem:[#allocation5 + $0x17c] sm:$0xf]
    %v186 = vunpack.c.l.b16 %v84
    %v187 = vunpack.c.h.b16 %v84
    %v188 = vunpack.c.l.b16 %v85
    %v189 = vunpack.c.h.b16 %v85
    %v190 = vunpack.c.l.b16 %v86
    %v191 = vunpack.c.h.b16 %v86
    %v192 = vpack.c.b16 %v186, %v186
    %v193 = vpack.c.b16 %v187, %v187
    %v194 = vpack.c.b16 %v188, %v188
    %v195 = vpack.c.b16 %v189, %v189
    %v196 = vpack.c.b16 %v190, %v190
    %v197 = vpack.c.b16 %v191, %v191
    %v300 = vunpack.c.l.b16 %v87
    %v301 = vunpack.c.l.b16 %v88
    %v302 = vunpack.c.l.b16 %v89
    %v303 = vunpack.c.l.b16 %v90
    %v304 = vunpack.c.l.b16 %v91
    %v305 = vunpack.c.l.b16 %v92
    %v306 = vunpack.c.l.b16 %v93
    %v307 = vunpack.c.l.b16 %v94
    %v308 = vunpack.c.l.b16 %v95
    %v309 = vunpack.c.l.b16 %v96
    %v310 = vunpack.c.l.b16 %v97
    %v311 = vunpack.c.l.b16 %v98
    %v312 = vunpack.c.l.b16 %v99
    %v313 = vunpack.c.l.b16 %v100
    %v314 = vunpack.c.l.b16 %v101
    %v315 = vunpack.c.l.b16 %v102
    %v316 = vunpack.c.l.b16 %v103
    %v317 = vunpack.c.l.b16 %v104
    %v318 = vunpack.c.l.b16 %v105
    %v319 = vunpack.c.l.b16 %v106
    %v320 = vunpack.c.l.b16 %v107
    %v321 = vunpack.c.l.b16 %v108
    %v322 = vunpack.c.l.b16 %v109
    %v323 = vunpack.c.l.b16 %v110
    %v324 = vunpack.c.l.b16 %v111
    %v325 = vunpack.c.l.b16 %v112
    %v326 = vunpack.c.l.b16 %v113
    %v327 = vunpack.c.l.b16 %v114
    %v328 = vunpack.c.l.b16 %v115
    %v329 = vunpack.c.l.b16 %v116
    %v330 = vunpack.c.l.b16 %v117
    %v331 = vunpack.c.l.b16 %v118
    %v332 = vunpack.c.l.b16 %v119
    %v333 = vunpack.c.l.b16 %v120
    %v334 = vunpack.c.l.b16 %v121
    %v335 = vunpack.c.l.b16 %v122
    %v336 = vunpack.c.l.b16 %v123
    %v337 = vunpack.c.l.b16 %v124
    %v338 = vunpack.c.l.b16 %v125
    %v339 = vunpack.c.l.b16 %v126
    %v340 = vunpack.c.l.b16 %v127
    %v341 = vunpack.c.l.b16 %v128
    %v342 = vunpack.c.l.b16 %v129
    %v343 = vunpack.c.l.b16 %v130
    %v344 = vunpack.c.l.b16 %v131
    %v345 = vunpack.c.l.b16 %v132
    %v346 = vunpack.c.l.b16 %v133
    %v347 = vunpack.c.l.b16 %v134
    %v348 = vunpack.c.l.b16 %v135
    %v349 = vunpack.c.l.b16 %v136
    %v350 = vunpack.c.l.b16 %v137
    %v351 = vunpack.c.l.b16 %v138
    %v352 = vunpack.c.l.b16 %v139
    %v353 = vunpack.c.l.b16 %v140
    %v354 = vunpack.c.l.b16 %v141
    %v355 = vunpack.c.l.b16 %v142
    %v356 = vunpack.c.l.b16 %v143
    %v357 = vunpack.c.l.b16 %v144
    %v358 = vunpack.c.l.b16 %v145
    %v359 = vunpack.c.l.b16 %v146
    %v360 = vunpack.c.l.b16 %v147
    %v361 = vunpack.c.l.b16 %v148
    %v362 = vunpack.c.l.b16 %v149
    %v363 = vunpack.c.l.b16 %v150
    %v364 = vunpack.c.l.b16 %v151
    %v365 = vunpack.c.l.b16 %v152
    %v366 = vunpack.c.l.b16 %v153
    %v367 = vunpack.c.l.b16 %v154
    %v368 = vunpack.c.l.b16 %v155
    %v369 = vunpack.c.l.b16 %v156
    %v370 = vunpack.c.l.b16 %v157
    %v371 = vunpack.c.l.b16 %v158
    %v372 = vunpack.c.l.b16 %v159
    %v373 = vunpack.c.l.b16 %v160
    %v374 = vunpack.c.l.b16 %v161
    %v375 = vunpack.c.l.b16 %v162
    %v376 = vunpack.c.l.b16 %v163
    %v377 = vunpack.c.l.b16 %v164
    %v378 = vunpack.c.l.b16 %v165
    %v379 = vunpack.c.l.b16 %v166
    %v380 = vunpack.c.l.b16 %v167
    %v381 = vunpack.c.l.b16 %v168
    %v382 = vunpack.c.l.b16 %v169
    %v383 = vunpack.c.l.b16 %v170
    %v384 = vunpack.c.l.b16 %v171
    %v385 = vunpack.c.l.b16 %v172
    %v386 = vunpack.c.l.b16 %v173
    %v387 = vunpack.c.l.b16 %v174
    %v388 = vunpack.c.l.b16 %v175
    %v389 = vunpack.c.l.b16 %v176
    %v390 = vunpack.c.l.b16 %v177
    %v391 = vunpack.c.l.b16 %v178
    %v392 = vunpack.c.l.b16 %v179
    %v393 = vunpack.c.l.b16 %v180
    %v394 = vunpack.c.l.b16 %v181
    %v395 = vunpack.c.l.b16 %v182
    %v396 = vpack.c.b16 %v301, %v300
    %v397 = vpack.c.b16 %v303, %v302
    %v398 = vpack.c.b16 %v305, %v304
    %v399 = vpack.c.b16 %v307, %v306
    %v400 = vpack.c.b16 %v309, %v308
    %v401 = vpack.c.b16 %v311, %v310
    %v402 = vpack.c.b16 %v313, %v312
    %v403 = vpack.c.b16 %v315, %v314
    %v404 = vpack.c.b16 %v317, %v316
    %v405 = vpack.c.b16 %v319, %v318
    %v406 = vpack.c.b16 %v321, %v320
    %v407 = vpack.c.b16 %v323, %v322
    %v408 = vpack.c.b16 %v325, %v324
    %v409 = vpack.c.b16 %v327, %v326
    %v410 = vpack.c.b16 %v329, %v328
    %v411 = vpack.c.b16 %v331, %v330
    %v412 = vpack.c.b16 %v333, %v332
    %v413 = vpack.c.b16 %v335, %v334
    %v414 = vpack.c.b16 %v337, %v336
    %v415 = vpack.c.b16 %v339, %v338
    %v416 = vpack.c.b16 %v341, %v340
    %v417 = vpack.c.b16 %v343, %v342
    %v418 = vpack.c.b16 %v345, %v344
    %v419 = vpack.c.b16 %v347, %v346
    %v420 = vpack.c.b16 %v349, %v348
    %v421 = vpack.c.b16 %v351, %v350
    %v422 = vpack.c.b16 %v353, %v352
    %v423 = vpack.c.b16 %v355, %v354
    %v424 = vpack.c.b16 %v357, %v356
    %v425 = vpack.c.b16 %v359, %v358
    %v426 = vpack.c.b16 %v361, %v360
    %v427 = vpack.c.b16 %v363, %v362
    %v428 = vpack.c.b16 %v365, %v364
    %v429 = vpack.c.b16 %v367, %v366
    %v430 = vpack.c.b16 %v369, %v368
    %v431 = vpack.c.b16 %v371, %v370
    %v432 = vpack.c.b16 %v373, %v372
    %v433 = vpack.c.b16 %v375, %v374
    %v434 = vpack.c.b16 %v377, %v376
    %v435 = vpack.c.b16 %v379, %v378
    %v436 = vpack.c.b16 %v381, %v380
    %v437 = vpack.c.b16 %v383, %v382
    %v438 = vpack.c.b16 %v385, %v384
    %v439 = vpack.c.b16 %v387, %v386
    %v440 = vpack.c.b16 %v389, %v388
    %v441 = vpack.c.b16 %v391, %v390
    %v442 = vpack.c.b16 %v393, %v392
    %v443 = vpack.c.b16 %v395, %v394
    %492 = vmatprep.subr.bf16.mxu0 0
    %493 = vmatpush1.bf16.msra.mxu0 %v403
    %494 = vmatprep.subr.bf16.mxu0 0
    %495 = vmatpush1.bf16.msra.mxu0 %v402
    %496 = vmatprep.subr.bf16.mxu0 0
    %497 = vmatpush1.bf16.msra.mxu0 %v401
    %498 = vmatprep.subr.bf16.mxu0 0
    %499 = vmatpush1.bf16.msra.mxu0 %v400
    %500 = vmatprep.subr.bf16.mxu0 0
    %501 = vmatpush1.bf16.msra.mxu0 %v399
    %502 = vmatprep.subr.bf16.mxu0 0
    %503 = vmatpush1.bf16.msra.mxu0 %v398
    %504 = vmatprep.subr.bf16.mxu0 0
    %505 = vmatpush1.bf16.msra.mxu0 %v397
    %506 = vmatprep.subr.bf16.mxu0 0
    %507 = vmatpush1.bf16.msra.mxu0 %v396
    %508 = vmatprep.subr.bf16.mxu0 0
    %509 = vmatpush2.bf16.msra.mxu0 %v411
    %510 = vmatprep.subr.bf16.mxu0 0
    %511 = vmatpush2.bf16.msra.mxu0 %v410
    %512 = vmatprep.subr.bf16.mxu0 0
    %513 = vmatpush2.bf16.msra.mxu0 %v409
    %514 = vmatprep.subr.bf16.mxu0 0
    %515 = vmatpush2.bf16.msra.mxu0 %v408
    %516 = vmatprep.subr.bf16.mxu0 0
    %517 = vmatpush2.bf16.msra.mxu0 %v407
    %518 = vmatprep.subr.bf16.mxu0 0
    %519 = vmatpush2.bf16.msra.mxu0 %v406
    %520 = vmatprep.subr.bf16.mxu0 0
    %521 = vmatpush2.bf16.msra.mxu0 %v405
    %522 = vmatprep.subr.bf16.mxu0 0
    %523 = vmatpush2.bf16.msra.mxu0 %v404
    %524 = vmatprep.mubr.bf16.mxu0 %v193
    %525 = vmatmul.mubr.bf16.gmra.mxu0 %v192
    %v526 = vpop.f32.mrf.mxu0
    %v527 = vadd.f32 0.0, %v526
    %v528 = vpop.f32.mrf.mxu0
    %v529 = vpop.f32.mrf.mxu0
    %v530 = vpop.f32.mrf.mxu0
    %531 = vdwg.mxu0
    %532 = vmatprep.subr.bf16.mxu0 0
    %533 = vmatpush1.bf16.msra.mxu0 %v419
    %534 = vmatprep.subr.bf16.mxu0 0
    %535 = vmatpush1.bf16.msra.mxu0 %v418
    %536 = vmatprep.subr.bf16.mxu0 0
    %537 = vmatpush1.bf16.msra.mxu0 %v417
    %538 = vmatprep.subr.bf16.mxu0 0
    %539 = vmatpush1.bf16.msra.mxu0 %v416
    %540 = vmatprep.subr.bf16.mxu0 0
    %541 = vmatpush1.bf16.msra.mxu0 %v415
    %542 = vmatprep.subr.bf16.mxu0 0
    %543 = vmatpush1.bf16.msra.mxu0 %v414
    %544 = vmatprep.subr.bf16.mxu0 0
    %545 = vmatpush1.bf16.msra.mxu0 %v413
    %546 = vmatprep.subr.bf16.mxu0 0
    %547 = vmatpush1.bf16.msra.mxu0 %v412
    %548 = vmatprep.subr.bf16.mxu0 0
    %549 = vmatpush2.bf16.msra.mxu0 %v427
    %550 = vmatprep.subr.bf16.mxu0 0
    %551 = vmatpush2.bf16.msra.mxu0 %v426
    %552 = vmatprep.subr.bf16.mxu0 0
    %553 = vmatpush2.bf16.msra.mxu0 %v425
    %554 = vmatprep.subr.bf16.mxu0 0
    %555 = vmatpush2.bf16.msra.mxu0 %v424
    %556 = vmatprep.subr.bf16.mxu0 0
    %557 = vmatpush2.bf16.msra.mxu0 %v423
    %558 = vmatprep.subr.bf16.mxu0 0
    %559 = vmatpush2.bf16.msra.mxu0 %v422
    %560 = vmatprep.subr.bf16.mxu0 0
    %561 = vmatpush2.bf16.msra.mxu0 %v421
    %562 = vmatprep.subr.bf16.mxu0 0
    %563 = vmatpush2.bf16.msra.mxu0 %v420
    %564 = vmatprep.mubr.bf16.mxu0 %v195
    %565 = vmatmul.mubr.bf16.gmra.mxu0 %v194
    %v566 = vpop.f32.mrf.mxu0
    %v567 = vadd.f32 %v527, %v566
    %v568 = vpop.f32.mrf.mxu0
    %v569 = vpop.f32.mrf.mxu0
    %v570 = vpop.f32.mrf.mxu0
    %571 = vdwg.mxu0
    %572 = vmatprep.subr.bf16.mxu0 0
    %573 = vmatpush1.bf16.msra.mxu0 %v435
    %574 = vmatprep.subr.bf16.mxu0 0
    %575 = vmatpush1.bf16.msra.mxu0 %v434
    %576 = vmatprep.subr.bf16.mxu0 0
    %577 = vmatpush1.bf16.msra.mxu0 %v433
    %578 = vmatprep.subr.bf16.mxu0 0
    %579 = vmatpush1.bf16.msra.mxu0 %v432
    %580 = vmatprep.subr.bf16.mxu0 0
    %581 = vmatpush1.bf16.msra.mxu0 %v431
    %582 = vmatprep.subr.bf16.mxu0 0
    %583 = vmatpush1.bf16.msra.mxu0 %v430
    %584 = vmatprep.subr.bf16.mxu0 0
    %585 = vmatpush1.bf16.msra.mxu0 %v429
    %586 = vmatprep.subr.bf16.mxu0 0
    %587 = vmatpush1.bf16.msra.mxu0 %v428
    %588 = vmatprep.subr.bf16.mxu0 0
    %589 = vmatpush2.bf16.msra.mxu0 %v443
    %590 = vmatprep.subr.bf16.mxu0 0
    %591 = vmatpush2.bf16.msra.mxu0 %v442
    %592 = vmatprep.subr.bf16.mxu0 0
    %593 = vmatpush2.bf16.msra.mxu0 %v441
    %594 = vmatprep.subr.bf16.mxu0 0
    %595 = vmatpush2.bf16.msra.mxu0 %v440
    %596 = vmatprep.subr.bf16.mxu0 0
    %597 = vmatpush2.bf16.msra.mxu0 %v439
    %598 = vmatprep.subr.bf16.mxu0 0
    %599 = vmatpush2.bf16.msra.mxu0 %v438
    %600 = vmatprep.subr.bf16.mxu0 0
    %601 = vmatpush2.bf16.msra.mxu0 %v437
    %602 = vmatprep.subr.bf16.mxu0 0
    %603 = vmatpush2.bf16.msra.mxu0 %v436
    %604 = vmatprep.mubr.bf16.mxu0 %v197
    %605 = vmatmul.mubr.bf16.gmra.mxu0 %v196
    %v606 = vpop.f32.mrf.mxu0
    %v607 = vadd.f32 %v567, %v606
    %v608 = vpop.f32.mrf.mxu0
    %v609 = vpop.f32.mrf.mxu0
    %v610 = vpop.f32.mrf.mxu0
    %611 = vdwg.mxu0
    %v612 = vmul.f32 %v607, %v607
    %613 = vadd.xlane.f32.xlu0 %v612
    %v614 = vpop.xlane.xlu0 %613
    %v615 = vmax.f32 %v614, 1e-24
    %v616 = vrsqrt.pop %v615
    %v617 = vmul.f32 %v607, %v616
    %v618 = vld [vmem:[#allocation10] sm:$0xf]
    %v619 = vld [vmem:[#allocation10 + $0x4] sm:$0xf]
    %v620 = vld [vmem:[#allocation10 + $0x8] sm:$0xf]
    %v621 = vld [vmem:[#allocation10 + $0xc] sm:$0xf]
    %v622 = vld [vmem:[#allocation10 + $0x10] sm:$0xf]
    %v623 = vld [vmem:[#allocation10 + $0x14] sm:$0xf]
    %v624 = vld [vmem:[#allocation10 + $0x18] sm:$0xf]
    %v625 = vld [vmem:[#allocation10 + $0x1c] sm:$0xf]
    %v626 = vld [vmem:[#allocation10 + $0x20] sm:$0xf]
    %v627 = vld [vmem:[#allocation10 + $0x24] sm:$0xf]
    %v628 = vld [vmem:[#allocation10 + $0x28] sm:$0xf]
    %v629 = vld [vmem:[#allocation10 + $0x2c] sm:$0xf]
    %v630 = vld [vmem:[#allocation10 + $0x30] sm:$0xf]
    %v631 = vld [vmem:[#allocation10 + $0x34] sm:$0xf]
    %v632 = vld [vmem:[#allocation10 + $0x38] sm:$0xf]
    %v633 = vld [vmem:[#allocation10 + $0x3c] sm:$0xf]
    %v634 = vld [vmem:[#allocation7] sm:$0xff]
    %v635 = vrot.slane %v634, 4
    %v636 = vadd.f32 %v634, %v635
    %v637 = vrot.slane %v636, 2
    %v638 = vadd.f32 %v636, %v637
    %v639 = vrot.slane %v638, 1
    %v640 = vadd.f32 %v638, %v639
    %v641 = vrcp.pop 8.0
    %v642 = vmul.f32 %v640, %v641
    %v643 = vld [vmem:[#allocation8] sm:$0xff]
    %v644 = vrot.slane %v643, 4
    %v645 = vadd.f32 %v643, %v644
    %v646 = vrot.slane %v645, 2
    %v647 = vadd.f32 %v645, %v646
    %v648 = vrot.slane %v647, 1
    %v649 = vadd.f32 %v647, %v648
    %v650 = vmul.f32 %v649, %v641
    %v651 = vpack.c.bf16 %v642, %v642
    %v668 = vunpack.c.l.b16 %v618
    %v669 = vunpack.c.l.b16 %v619
    %v670 = vunpack.c.l.b16 %v620
    %v671 = vunpack.c.l.b16 %v621
    %v672 = vunpack.c.l.b16 %v622
    %v673 = vunpack.c.l.b16 %v623
    %v674 = vunpack.c.l.b16 %v624
    %v675 = vunpack.c.l.b16 %v625
    %v676 = vunpack.c.l.b16 %v626
    %v677 = vunpack.c.l.b16 %v627
    %v678 = vunpack.c.l.b16 %v628
    %v679 = vunpack.c.l.b16 %v629
    %v680 = vunpack.c.l.b16 %v630
    %v681 = vunpack.c.l.b16 %v631
    %v682 = vunpack.c.l.b16 %v632
    %v683 = vunpack.c.l.b16 %v633
    %v684 = vpack.c.b16 %v669, %v668
    %v685 = vpack.c.b16 %v671, %v670
    %v686 = vpack.c.b16 %v673, %v672
    %v687 = vpack.c.b16 %v675, %v674
    %v688 = vpack.c.b16 %v677, %v676
    %v689 = vpack.c.b16 %v679, %v678
    %v690 = vpack.c.b16 %v681, %v680
    %v691 = vpack.c.b16 %v683, %v682
    %700 = vmatprep.subr.bf16.mxu0 0
    %701 = vmatpush1.bf16.msra.mxu0 %v691
    %702 = vmatprep.subr.bf16.mxu0 0
    %703 = vmatpush1.bf16.msra.mxu0 %v690
    %704 = vmatprep.subr.bf16.mxu0 0
    %705 = vmatpush1.bf16.msra.mxu0 %v689
    %706 = vmatprep.subr.bf16.mxu0 0
    %707 = vmatpush1.bf16.msra.mxu0 %v688
    %708 = vmatprep.subr.bf16.mxu0 0
    %709 = vmatpush1.bf16.msra.mxu0 %v687
    %710 = vmatprep.subr.bf16.mxu0 0
    %711 = vmatpush1.bf16.msra.mxu0 %v686
    %712 = vmatprep.subr.bf16.mxu0 0
    %713 = vmatpush1.bf16.msra.mxu0 %v685
    %714 = vmatprep.subr.bf16.mxu0 0
    %715 = vmatpush1.bf16.msra.mxu0 %v684
    %716 = vmatprep.subr.bf16.mxu0 0
    %717 = vmatpush2.bf16.msra.mxu0 0
    %718 = vmatprep.subr.bf16.mxu0 0
    %719 = vmatpush2.bf16.msra.mxu0 0
    %720 = vmatprep.subr.bf16.mxu0 0
    %721 = vmatpush2.bf16.msra.mxu0 0
    %722 = vmatprep.subr.bf16.mxu0 0
    %723 = vmatpush2.bf16.msra.mxu0 0
    %724 = vmatprep.subr.bf16.mxu0 0
    %725 = vmatpush2.bf16.msra.mxu0 0
    %726 = vmatprep.subr.bf16.mxu0 0
    %727 = vmatpush2.bf16.msra.mxu0 0
    %728 = vmatprep.subr.bf16.mxu0 0
    %729 = vmatpush2.bf16.msra.mxu0 0
    %730 = vmatprep.subr.bf16.mxu0 0
    %731 = vmatpush2.bf16.msra.mxu0 0
    %732 = vmatprep.mubr.bf16.mxu0 0
    %733 = vmatmul.mubr.bf16.gmra.mxu0 %v651
    %v734 = vpop.f32.mrf.mxu0
    %v735 = vadd.f32 0.0, %v734
    %v736 = vpop.f32.mrf.mxu0
    %v737 = vpop.f32.mrf.mxu0
    %v738 = vpop.f32.mrf.mxu0
    %739 = vdwg.mxu0
    %v740 = vpack.c.bf16 %v650, %v650
    %741 = vmatprep.subr.bf16.mxu0 0
    %742 = vmatpush1.bf16.msra.mxu0 %v691
    %743 = vmatprep.subr.bf16.mxu0 0
    %744 = vmatpush1.bf16.msra.mxu0 %v690
    %745 = vmatprep.subr.bf16.mxu0 0
    %746 = vmatpush1.bf16.msra.mxu0 %v689
    %747 = vmatprep.subr.bf16.mxu0 0
    %748 = vmatpush1.bf16.msra.mxu0 %v688
    %749 = vmatprep.subr.bf16.mxu0 0
    %750 = vmatpush1.bf16.msra.mxu0 %v687
    %751 = vmatprep.subr.bf16.mxu0 0
    %752 = vmatpush1.bf16.msra.mxu0 %v686
    %753 = vmatprep.subr.bf16.mxu0 0
    %754 = vmatpush1.bf16.msra.mxu0 %v685
    %755 = vmatprep.subr.bf16.mxu0 0
    %756 = vmatpush1.bf16.msra.mxu0 %v684
    %757 = vmatprep.subr.bf16.mxu0 0
    %758 = vmatpush2.bf16.msra.mxu0 0
    %759 = vmatprep.subr.bf16.mxu0 0
    %760 = vmatpush2.bf16.msra.mxu0 0
    %761 = vmatprep.subr.bf16.mxu0 0
    %762 = vmatpush2.bf16.msra.mxu0 0
    %763 = vmatprep.subr.bf16.mxu0 0
    %764 = vmatpush2.bf16.msra.mxu0 0
    %765 = vmatprep.subr.bf16.mxu0 0
    %766 = vmatpush2.bf16.msra.mxu0 0
    %767 = vmatprep.subr.bf16.mxu0 0
    %768 = vmatpush2.bf16.msra.mxu0 0
    %769 = vmatprep.subr.bf16.mxu0 0
    %770 = vmatpush2.bf16.msra.mxu0 0
    %771 = vmatprep.subr.bf16.mxu0 0
    %772 = vmatpush2.bf16.msra.mxu0 0
    %773 = vmatprep.mubr.bf16.mxu0 0
    %774 = vmatmul.mubr.bf16.gmra.mxu0 %v740
    %v775 = vpop.f32.mrf.mxu0
    %v776 = vadd.f32 0.0, %v775
    %v777 = vpop.f32.mrf.mxu0
    %v778 = vpop.f32.mrf.mxu0
    %v779 = vpop.f32.mrf.mxu0
    %780 = vdwg.mxu0
    %v781 = vmul.f32 %v735, %v735
    %vm782 = vcmask 1040384
    %v783 = vsel %vm782, %v781, 0.0
    %784 = vadd.xlane.f32.xlu0 %v783
    %v785 = vpop.xlane.xlu0 %784
    %v786 = vmax.f32 %v785, 1e-24
    %v787 = vrsqrt.pop %v786
    %v788 = vmul.f32 %v735, %v787
    %v789 = vmul.f32 %v776, %v776
    %v790 = vsel %vm782, %v789, 0.0
    %791 = vadd.xlane.f32.xlu0 %v790
    %v792 = vpop.xlane.xlu0 %791
    %v793 = vmax.f32 %v792, 1e-24
    %v794 = vrsqrt.pop %v793
    %v795 = vmul.f32 %v776, %v794
    %v796 = vrot.slane %v617, 4
    %v797 = vadd.f32 %v617, %v796
    %v798 = vrot.slane %v797, 2
    %v799 = vadd.f32 %v797, %v798
    %v800 = vrot.slane %v799, 1
    %v801 = vadd.f32 %v799, %v800
    %v802 = vmul.f32 %v801, %v641
    %v803 = vmul.f32 %v802, %v795
    %v804 = vsel %vm782, %v803, 0.0
    %805 = vadd.xlane.f32.xlu0 %v804
    %v806 = vpop.xlane.xlu0 %805
    %v807 = vlaneseq
    %v808 = vshrl.u32 %v807, 7
    %v809 = vsub.s32 0, %v808
    %v810 = vrot.slane %v788, %v809
    %v811 = vmul.f32 %v617, %v810
    %812 = vadd.xlane.f32.xlu0 %v811
    %v813 = vpop.xlane.xlu0 %812
    %v814 = vmul.f32 %v806, 0.5
    %v815 = vmul.f32 %v813, 0.5
    %v816 = vlaneseq
    %v817 = vshrl.u32 %v816, 7
    %v818 = vsub.s32 0, %v817
    %v819 = vrot.slane %v814, %v818
    %v820 = vadd.f32 %v819, %v815
    %821 = vst [vmem:[#allocation11] sm:$0xff] %v813
    %822 = vst [vmem:[#allocation11 + $0x8] sm:$0xff] %v820
    %v823 = vlaneseq
    %v824 = vshrl.u32 %v823, 7
    %v825 = vsub.s32 0, %v824
    %v826 = vrot.slane %v806, %v825
    %827 = vst [vmem:[#allocation11 + $0x10] sm:$0xff] %v826
    // Predicated region
    $region42: #{tpu_custom_call.1} parent=1 // pred_check
      _
    $region43: #{tpu_custom_call.1} parent=1 // pred_check_branch
      %829 = sbr.rel (0) target = $region45
    $region44: #{tpu_custom_call.1} parent=1 // pred_region
      %s831 = ssub.s32 384, 384
      %832 = vsyncadd [#allocation4], %s831
      %s834 = sshll.u32 [#allocation11], 4
      %s835 = int_to_ptr.vmem [resolvable:$true] %s834
      %837 = dma.vmem_to_hbm [thread:$0]  %s835, 384, %s5, [#allocation4]
    $region45: #{tpu_custom_call.1} parent=1 // pred_fallthru
      _
    // Predicated region
    $region46: #{tpu_custom_call.1} parent=1 // pred_check
      _
    $region47: #{tpu_custom_call.1} parent=1 // pred_check_branch
      %839 = sbr.rel (0) target = $region49
    $region48: #{tpu_custom_call.1} parent=1 // pred_region
      %840 = dma.done [#allocation4], 384
    $region49: #{tpu_custom_call.1} parent=1 // pred_fallthru
      _
    %841 = vsyncpa [#allocation3], 1
    %842 = vsyncpa [#allocation6], 1
    %843 = vsyncpa [#allocation9], 1
    %844 = vsyncpa [#allocation4], 1

</llo_original>
